<compile_context>
chip_gen: v7x
topology: tpu7x:2x2x1
jax: 0.10.0
libtpu: 0.0.40
codegen_flags: <defaults>
</compile_context>

<pallas_src>
import jax
import jax.numpy as jnp
from jax.experimental import pallas as pl
from jax.experimental.pallas import tpu as pltpu


def _dot_t(a, b):
    """a @ b.T on the MXU without materializing a transpose.

    Contracts the last dim of `a` with the last dim of `b` (PyTorch weight
    layout is (out_features, in_features))."""
    return jax.lax.dot_general(
        a, b, (((1,), (1,)), ((), ())), preferred_element_type=jnp.float32)


def _make_rnn_dense_kernel(S, Bp):
    """Kernel factory; S (seq len) and Bp (padded batch) are baked in."""

    def kernel(x_ref, w_ih_ref, w_hh_ref, b_ih_ref, b_hh_ref,
               w_d_ref, b_d_ref, out_ref):
        # --- Prologue (off the recurrent chain): one batched input projection
        #     covering every timestep, with both RNN biases folded in.
        b_rnn = b_ih_ref[...] + b_hh_ref[...]                     # (1, H)
        xp = _dot_t(x_ref[...], w_ih_ref[...]) + b_rnn            # (S*Bp, H)

        w_hh = w_hh_ref[...]                                      # hoisted once

        # --- Recurrence: only h_{t-1} @ W_hh^T and the tanh sit on the serial
        #     dependency chain.  Fully unrolled (S is small & static); h_t
        #     values stay in vregs (no VMEM scratch round trip).
        hs = []
        h = jnp.tanh(xp[0:Bp, :])                                 # h0 == 0
        hs.append(h)
        for t in range(1, S):
            pre = xp[t * Bp:(t + 1) * Bp, :] + _dot_t(h, w_hh)
            h = jnp.tanh(pre)
            hs.append(h)

        # --- Epilogue: single batched dense projection + one output store.
        h_all = jnp.concatenate(hs, axis=0)                       # (S*Bp, H)
        out_ref[...] = (_dot_t(h_all, w_d_ref[...])
                        + b_d_ref[...]).astype(out_ref.dtype)

    return kernel


@jax.jit
def rnn_model_forward(x, w_ih, w_hh, b_ih, b_hh, w_dense, b_dense):
    """x: (S, B, I) float32. Weights follow PyTorch conventions:
       w_ih (H, I), w_hh (H, H), b_ih (H,), b_hh (H,),
       w_dense (O, H), b_dense (O,)."""
    S, B, I = x.shape
    H = w_hh.shape[0]
    O = w_dense.shape[0]

    # Pad batch up to a full sublane tile so per-step slices are unmasked.
    SUB = 8
    Bp = max(SUB, ((B + SUB - 1) // SUB) * SUB)
    x_pad = jnp.pad(x, ((0, 0), (0, Bp - B), (0, 0))) if Bp != B else x
    x2d = x_pad.reshape(S * Bp, I)          # leading-dim merge (free reshape)

    # Only metadata-level reshapes here; no transposes, no bias adds -- those
    # happen inside the kernel so nothing un-fusable precedes the custom call.
    b_ih2 = b_ih.reshape(1, H)
    b_hh2 = b_hh.reshape(1, H)
    b_d2 = b_dense.reshape(1, O)

    out2d = pl.pallas_call(
        _make_rnn_dense_kernel(S, Bp),
        out_shape=jax.ShapeDtypeStruct((S * Bp, O), jnp.float32),
        # Single invocation (no grid): every operand is one full VMEM block.
        in_specs=[pl.BlockSpec(memory_space=pltpu.MemorySpace.VMEM)] * 7,
        out_specs=pl.BlockSpec(memory_space=pltpu.MemorySpace.VMEM),
    )(x2d, w_ih, w_hh, b_ih2, b_hh2, w_dense, b_d2)

    return out2d.reshape(S, Bp, O)[:, :B, :]


def reference_forward(x, w_ih, w_hh, b_ih, b_hh, w_dense, b_dense):
    """Pure-JAX reference matching PyTorch nn.RNN(tanh) + nn.Linear."""
    S, B, I = x.shape
    H = w_hh.shape[0]

    def step(h, x_t):
        h_new = jnp.tanh(x_t @ w_ih.T + b_ih + h @ w_hh.T + b_hh)
        return h_new, h_new

    h0 = jnp.zeros((B, H), jnp.float32)
    _, hidden = jax.lax.scan(step, h0, x)              # (S, B, H)
    return hidden @ w_dense.T + b_dense                # (S, B, O)


if __name__ == "__main__":
    # Small shapes implied by the module's params.
    seq_length = 8
    batch_size = 4
    input_size = 16
    hidden_size = 32
    output_size = 16   # params.dim

    key = jax.random.PRNGKey(0)
    ks = jax.random.split(key, 7)
    scale = 1.0 / jnp.sqrt(hidden_size)

    x = jax.random.normal(ks[0], (seq_length, batch_size, input_size),
                          dtype=jnp.float32)
    w_ih = jax.random.uniform(ks[1], (hidden_size, input_size),
                              minval=-scale, maxval=scale, dtype=jnp.float32)
    w_hh = jax.random.uniform(ks[2], (hidden_size, hidden_size),
                              minval=-scale, maxval=scale, dtype=jnp.float32)
    b_ih = jax.random.uniform(ks[3], (hidden_size,),
                              minval=-scale, maxval=scale, dtype=jnp.float32)
    b_hh = jax.random.uniform(ks[4], (hidden_size,),
                              minval=-scale, maxval=scale, dtype=jnp.float32)
    w_dense = jax.random.uniform(ks[5], (output_size, hidden_size),
                                 minval=-scale, maxval=scale, dtype=jnp.float32)
    b_dense = jax.random.uniform(ks[6], (output_size,),
                                 minval=-scale, maxval=scale, dtype=jnp.float32)

    out = rnn_model_forward(x, w_ih, w_hh, b_ih, b_hh, w_dense, b_dense)
    out = jax.block_until_ready(out)

    ref = reference_forward(x, w_ih, w_hh, b_ih, b_hh, w_dense, b_dense)
    assert out.shape == (seq_length, batch_size, output_size)
    assert jnp.allclose(out, ref, atol=1e-5, rtol=1e-5), \
        f"max err {jnp.max(jnp.abs(out - ref))}"

    # TODO(synk): 'LSTM'/'Seq2seq'/'Transformer' branches of build_model are
    # not implemented; this kernel covers the model_type='RNN' forward path.
    print("KERNEL_OK")
</pallas_src>

<mosaic_0001>
module attributes {stable_mosaic.version = 11 : i64} {
  func.func @kernel(%arg0: memref<64x16xf32, #tpu.memory_space<vmem>>, %arg1: memref<32x16xf32, #tpu.memory_space<vmem>>, %arg2: memref<32x32xf32, #tpu.memory_space<vmem>>, %arg3: memref<1x32xf32, #tpu.memory_space<vmem>>, %arg4: memref<1x32xf32, #tpu.memory_space<vmem>>, %arg5: memref<16x32xf32, #tpu.memory_space<vmem>>, %arg6: memref<1x16xf32, #tpu.memory_space<vmem>>, %arg7: memref<64x16xf32, #tpu.memory_space<vmem>>) attributes {dimension_semantics = [], scalar_prefetch = 0 : i64, scratch_operands = 0 : i64, tpu.core_type = #tpu.core_type<tc>} {
    %c0 = arith.constant 0 : index
    %c0_0 = arith.constant 0 : index
    %0 = vector.load %arg3[%c0, %c0_0] : memref<1x32xf32, #tpu.memory_space<vmem>>, vector<1x32xf32>
    %c0_1 = arith.constant 0 : index
    %c0_2 = arith.constant 0 : index
    %1 = vector.load %arg4[%c0_1, %c0_2] : memref<1x32xf32, #tpu.memory_space<vmem>>, vector<1x32xf32>
    %2 = arith.addf %0, %1 : vector<1x32xf32>
    %c0_3 = arith.constant 0 : index
    %c0_4 = arith.constant 0 : index
    %3 = vector.load %arg0[%c0_3, %c0_4] : memref<64x16xf32, #tpu.memory_space<vmem>>, vector<64x16xf32>
    %c0_5 = arith.constant 0 : index
    %c0_6 = arith.constant 0 : index
    %4 = vector.load %arg1[%c0_5, %c0_6] : memref<32x16xf32, #tpu.memory_space<vmem>>, vector<32x16xf32>
    %cst = arith.constant dense<0.000000e+00> : vector<64x32xf32>
    %5 = tpu.matmul %3, %4, %cst {dimension_numbers = #tpu.dot_dimension_numbers<[1], [1], [0], [0], [0, 0, 1, 0], [], []>} : vector<64x16xf32>, vector<32x16xf32>, vector<64x32xf32> -> vector<64x32xf32>
    %6 = vector.broadcast %2 : vector<1x32xf32> to vector<64x32xf32>
    %7 = arith.addf %5, %6 : vector<64x32xf32>
    %c0_7 = arith.constant 0 : index
    %c0_8 = arith.constant 0 : index
    %8 = vector.load %arg2[%c0_7, %c0_8] : memref<32x32xf32, #tpu.memory_space<vmem>>, vector<32x32xf32>
    %9 = vector.extract_strided_slice %7 {offsets = [0, 0], sizes = [8, 32], strides = [1, 1]} : vector<64x32xf32> to vector<8x32xf32>
    %10 = math.tanh %9 : vector<8x32xf32>
    %11 = vector.extract_strided_slice %7 {offsets = [8, 0], sizes = [8, 32], strides = [1, 1]} : vector<64x32xf32> to vector<8x32xf32>
    %cst_9 = arith.constant dense<0.000000e+00> : vector<8x32xf32>
    %12 = tpu.matmul %10, %8, %cst_9 {dimension_numbers = #tpu.dot_dimension_numbers<[1], [1], [0], [0], [0, 0, 1, 0], [], []>} : vector<8x32xf32>, vector<32x32xf32>, vector<8x32xf32> -> vector<8x32xf32>
    %13 = arith.addf %11, %12 : vector<8x32xf32>
    %14 = math.tanh %13 : vector<8x32xf32>
    %15 = vector.extract_strided_slice %7 {offsets = [16, 0], sizes = [8, 32], strides = [1, 1]} : vector<64x32xf32> to vector<8x32xf32>
    %cst_10 = arith.constant dense<0.000000e+00> : vector<8x32xf32>
    %16 = tpu.matmul %14, %8, %cst_10 {dimension_numbers = #tpu.dot_dimension_numbers<[1], [1], [0], [0], [0, 0, 1, 0], [], []>} : vector<8x32xf32>, vector<32x32xf32>, vector<8x32xf32> -> vector<8x32xf32>
    %17 = arith.addf %15, %16 : vector<8x32xf32>
    %18 = math.tanh %17 : vector<8x32xf32>
    %19 = vector.extract_strided_slice %7 {offsets = [24, 0], sizes = [8, 32], strides = [1, 1]} : vector<64x32xf32> to vector<8x32xf32>
    %cst_11 = arith.constant dense<0.000000e+00> : vector<8x32xf32>
    %20 = tpu.matmul %18, %8, %cst_11 {dimension_numbers = #tpu.dot_dimension_numbers<[1], [1], [0], [0], [0, 0, 1, 0], [], []>} : vector<8x32xf32>, vector<32x32xf32>, vector<8x32xf32> -> vector<8x32xf32>
    %21 = arith.addf %19, %20 : vector<8x32xf32>
    %22 = math.tanh %21 : vector<8x32xf32>
    %23 = vector.extract_strided_slice %7 {offsets = [32, 0], sizes = [8, 32], strides = [1, 1]} : vector<64x32xf32> to vector<8x32xf32>
    %cst_12 = arith.constant dense<0.000000e+00> : vector<8x32xf32>
    %24 = tpu.matmul %22, %8, %cst_12 {dimension_numbers = #tpu.dot_dimension_numbers<[1], [1], [0], [0], [0, 0, 1, 0], [], []>} : vector<8x32xf32>, vector<32x32xf32>, vector<8x32xf32> -> vector<8x32xf32>
    %25 = arith.addf %23, %24 : vector<8x32xf32>
    %26 = math.tanh %25 : vector<8x32xf32>
    %27 = vector.extract_strided_slice %7 {offsets = [40, 0], sizes = [8, 32], strides = [1, 1]} : vector<64x32xf32> to vector<8x32xf32>
    %cst_13 = arith.constant dense<0.000000e+00> : vector<8x32xf32>
    %28 = tpu.matmul %26, %8, %cst_13 {dimension_numbers = #tpu.dot_dimension_numbers<[1], [1], [0], [0], [0, 0, 1, 0], [], []>} : vector<8x32xf32>, vector<32x32xf32>, vector<8x32xf32> -> vector<8x32xf32>
    %29 = arith.addf %27, %28 : vector<8x32xf32>
    %30 = math.tanh %29 : vector<8x32xf32>
    %31 = vector.extract_strided_slice %7 {offsets = [48, 0], sizes = [8, 32], strides = [1, 1]} : vector<64x32xf32> to vector<8x32xf32>
    %cst_14 = arith.constant dense<0.000000e+00> : vector<8x32xf32>
    %32 = tpu.matmul %30, %8, %cst_14 {dimension_numbers = #tpu.dot_dimension_numbers<[1], [1], [0], [0], [0, 0, 1, 0], [], []>} : vector<8x32xf32>, vector<32x32xf32>, vector<8x32xf32> -> vector<8x32xf32>
    %33 = arith.addf %31, %32 : vector<8x32xf32>
    %34 = math.tanh %33 : vector<8x32xf32>
    %35 = vector.extract_strided_slice %7 {offsets = [56, 0], sizes = [8, 32], strides = [1, 1]} : vector<64x32xf32> to vector<8x32xf32>
    %cst_15 = arith.constant dense<0.000000e+00> : vector<8x32xf32>
    %36 = tpu.matmul %34, %8, %cst_15 {dimension_numbers = #tpu.dot_dimension_numbers<[1], [1], [0], [0], [0, 0, 1, 0], [], []>} : vector<8x32xf32>, vector<32x32xf32>, vector<8x32xf32> -> vector<8x32xf32>
    %37 = arith.addf %35, %36 : vector<8x32xf32>
    %38 = math.tanh %37 : vector<8x32xf32>
    %39 = tpu.concatenate %10, %14, %18, %22, %26, %30, %34, %38 in 0 : vector<8x32xf32>, vector<8x32xf32>, vector<8x32xf32>, vector<8x32xf32>, vector<8x32xf32>, vector<8x32xf32>, vector<8x32xf32>, vector<8x32xf32> -> vector<64x32xf32>
    %c0_16 = arith.constant 0 : index
    %c0_17 = arith.constant 0 : index
    %40 = vector.load %arg5[%c0_16, %c0_17] : memref<16x32xf32, #tpu.memory_space<vmem>>, vector<16x32xf32>
    %cst_18 = arith.constant dense<0.000000e+00> : vector<64x16xf32>
    %41 = tpu.matmul %39, %40, %cst_18 {dimension_numbers = #tpu.dot_dimension_numbers<[1], [1], [0], [0], [0, 0, 1, 0], [], []>} : vector<64x32xf32>, vector<16x32xf32>, vector<64x16xf32> -> vector<64x16xf32>
    %c0_19 = arith.constant 0 : index
    %c0_20 = arith.constant 0 : index
    %42 = vector.load %arg6[%c0_19, %c0_20] : memref<1x16xf32, #tpu.memory_space<vmem>>, vector<1x16xf32>
    %43 = vector.broadcast %42 : vector<1x16xf32> to vector<64x16xf32>
    %44 = arith.addf %41, %43 : vector<64x16xf32>
    %c0_21 = arith.constant 0 : index
    %c0_22 = arith.constant 0 : index
    %45 = vector.load %arg7[%c0_21, %c0_22] : memref<64x16xf32, #tpu.memory_space<vmem>>, vector<64x16xf32>
    tpu.vector_store %arg7[%c0_21, %c0_22], %44 {strides = array<i32>} : memref<64x16xf32, #tpu.memory_space<vmem>>, vector<64x16xf32>,
    return
  }
}

</mosaic_0001>

<llo_original>
// kernel: rnn_model_forward.1
$region0: #{rnn_model_forward.1}
  #allocation0 [shape = 'u32[]', space=smem, size = 0x4, offset = 0x4, fixed_abs, tag = 'smem constant byte address 0x4 - core index']
  #allocation1 [shape = 'u32[144,128]{1,0:T(1,128)}', space=vmem, size = 0x12000, scoped, tag = 'internal scratch']
  %s0 = inlined_call_operand.vmem [shape: f32[64,16], index: 0, kind: input, shape index: {}]
  %s1 = inlined_call_operand.vmem [shape: f32[32,16], index: 1, kind: input, shape index: {}]
  %s2 = inlined_call_operand.vmem [shape: f32[32,32], index: 2, kind: input, shape index: {}]
  %s3 = inlined_call_operand.vmem [shape: f32[1,32], index: 3, kind: input, shape index: {}]
  %s4 = inlined_call_operand.vmem [shape: f32[1,32], index: 4, kind: input, shape index: {}]
  %s5 = inlined_call_operand.vmem [shape: f32[16,32], index: 5, kind: input, shape index: {}]
  %s6 = inlined_call_operand.vmem [shape: f32[1,16], index: 6, kind: input, shape index: {}]
  %s7 = inlined_call_operand.vmem [shape: f32[64,16], index: 7, kind: output, shape index: {}]
  %s8 = sld [smem:[#allocation0]]
  $region38: #{rnn_model_forward.1} parent=0
    _
  %s10 = ssub.s32 1, %s8
  %s11 = scalar_select 0, %s10, %s8
  // Predicated region
  $region2: #{rnn_model_forward.1} parent=0 // pred_check
    _
  $region3: #{rnn_model_forward.1} parent=0 // pred_check_branch
    %13 = sbr.rel (0) target = $region5
  $region4: #{rnn_model_forward.1} parent=0 // pred_region
    _
  $region5: #{rnn_model_forward.1} parent=0 // pred_fallthru
    _
  // Predicated region
  $region6: #{rnn_model_forward.1} parent=0 // pred_check
    _
  $region7: #{rnn_model_forward.1} parent=0 // pred_check_branch
    %15 = sbr.rel (0) target = $region9
  $region8: #{rnn_model_forward.1} parent=0 // pred_region
    _
  $region9: #{rnn_model_forward.1} parent=0 // pred_fallthru
    _
  // Predicated region
  $region10: #{rnn_model_forward.1} parent=0 // pred_check
    _
  $region11: #{rnn_model_forward.1} parent=0 // pred_check_branch
    %17 = sbr.rel (0) target = $region13
  $region12: #{rnn_model_forward.1} parent=0 // pred_region
    _
  $region13: #{rnn_model_forward.1} parent=0 // pred_fallthru
    _
  // Predicated region
  $region14: #{rnn_model_forward.1} parent=0 // pred_check
    _
  $region15: #{rnn_model_forward.1} parent=0 // pred_check_branch
    %19 = sbr.rel (0) target = $region17
  $region16: #{rnn_model_forward.1} parent=0 // pred_region
    _
  $region17: #{rnn_model_forward.1} parent=0 // pred_fallthru
    _
  // Predicated region
  $region18: #{rnn_model_forward.1} parent=0 // pred_check
    _
  $region19: #{rnn_model_forward.1} parent=0 // pred_check_branch
    %21 = sbr.rel (0) target = $region21
  $region20: #{rnn_model_forward.1} parent=0 // pred_region
    _
  $region21: #{rnn_model_forward.1} parent=0 // pred_fallthru
    _
  // Predicated region
  $region22: #{rnn_model_forward.1} parent=0 // pred_check
    _
  $region23: #{rnn_model_forward.1} parent=0 // pred_check_branch
    %23 = sbr.rel (0) target = $region25
  $region24: #{rnn_model_forward.1} parent=0 // pred_region
    _
  $region25: #{rnn_model_forward.1} parent=0 // pred_fallthru
    _
  // Predicated region
  $region26: #{rnn_model_forward.1} parent=0 // pred_check
    _
  $region27: #{rnn_model_forward.1} parent=0 // pred_check_branch
    %25 = sbr.rel (0) target = $region29
  $region28: #{rnn_model_forward.1} parent=0 // pred_region
    _
  $region29: #{rnn_model_forward.1} parent=0 // pred_fallthru
    _
  %v26 = vld [vmem:[%s3] sm:$0x1]
  %v27 = vld [vmem:[%s4] sm:$0x1]
  %v28 = vadd.f32 %v26, %v27
  %v29 = vld [vmem:[%s0] sm:$0xff]
  %v30 = vld [vmem:[%s0 + $0x8] sm:$0xff]
  %v31 = vld [vmem:[%s0 + $0x10] sm:$0xff]
  %v32 = vld [vmem:[%s0 + $0x18] sm:$0xff]
  %v33 = vld [vmem:[%s0 + $0x20] sm:$0xff]
  %v34 = vld [vmem:[%s0 + $0x28] sm:$0xff]
  %v35 = vld [vmem:[%s0 + $0x30] sm:$0xff]
  %v36 = vld [vmem:[%s0 + $0x38] sm:$0xff]
  %v37 = vld [vmem:[%s1] sm:$0xff]
  %v38 = vld [vmem:[%s1 + $0x8] sm:$0xff]
  %v39 = vld [vmem:[%s1 + $0x10] sm:$0xff]
  %v40 = vld [vmem:[%s1 + $0x18] sm:$0xff]
  %v42 = vlaneseq
  %v43 = vshrl.u32 %v42, 7
  %v44 = vsub.s32 0, %v43
  %v45 = vrot.slane %v28, %v44
  %vm47 = vcmask 130048
  %v49 = vsel %vm47, %v29, 0
  %v52 = vsel %vm47, %v30, 0
  %v55 = vsel %vm47, %v31, 0
  %v58 = vsel %vm47, %v32, 0
  %v61 = vsel %vm47, %v33, 0
  %v64 = vsel %vm47, %v34, 0
  %v67 = vsel %vm47, %v35, 0
  %v70 = vsel %vm47, %v36, 0
  %v73 = vsel %vm47, %v37, 0
  %v76 = vsel %vm47, %v38, 0
  %v79 = vsel %vm47, %v39, 0
  %v82 = vsel %vm47, %v40, 0
  %84 = vmatprep.subr.mxu0 0.0
  %85 = vmatpush1.xpose.msra.mxu0 %v73
  %86 = vmatprep.subr.mxu0 0.0
  %87 = vmatpush1.xpose.msra.mxu0 %v76
  %88 = vmatprep.subr.mxu0 0.0
  %89 = vmatpush1.xpose.msra.mxu0 %v79
  %90 = vmatprep.subr.mxu0 0.0
  %91 = vmatpush1.xpose.msra.mxu0 %v82
  %92 = vmatprep.subr.mxu0 0.0
  %93 = vmatpush1.xpose.msra.mxu0 0.0
  %94 = vmatprep.subr.mxu0 0.0
  %95 = vmatpush1.xpose.msra.mxu0 0.0
  %96 = vmatprep.subr.mxu0 0.0
  %97 = vmatpush1.xpose.msra.mxu0 0.0
  %98 = vmatprep.subr.mxu0 0.0
  %99 = vmatpush1.xpose.msra.mxu0 0.0
  %100 = vmatprep.subr.mxu0 0.0
  %101 = vmatpush1.xpose.msra.mxu0 0.0
  %102 = vmatprep.subr.mxu0 0.0
  %103 = vmatpush1.xpose.msra.mxu0 0.0
  %104 = vmatprep.subr.mxu0 0.0
  %105 = vmatpush1.xpose.msra.mxu0 0.0
  %106 = vmatprep.subr.mxu0 0.0
  %107 = vmatpush1.xpose.msra.mxu0 0.0
  %108 = vmatprep.subr.mxu0 0.0
  %109 = vmatpush1.xpose.msra.mxu0 0.0
  %110 = vmatprep.subr.mxu0 0.0
  %111 = vmatpush1.xpose.msra.mxu0 0.0
  %112 = vmatprep.subr.mxu0 0.0
  %113 = vmatpush1.xpose.msra.mxu0 0.0
  %114 = vmatprep.subr.mxu0 0.0
  %115 = vmatpush1.xpose.msra.mxu0 0.0
  %116 = vmatprep.subr.mxu0 0.0
  %117 = vmatpush1.xpose.msra.mxu0 0.0
  %118 = vmatprep.subr.mxu0 0.0
  %119 = vmatpush1.xpose.msra.mxu0 0.0
  %120 = vmatprep.subr.mxu0 0.0
  %121 = vmatpush1.xpose.msra.mxu0 0.0
  %122 = vmatprep.subr.mxu0 0.0
  %123 = vmatpush1.xpose.msra.mxu0 0.0
  %124 = vmatprep.subr.mxu0 0.0
  %125 = vmatpush1.xpose.msra.mxu0 0.0
  %126 = vmatprep.subr.mxu0 0.0
  %127 = vmatpush1.xpose.msra.mxu0 0.0
  %128 = vmatprep.subr.mxu0 0.0
  %129 = vmatpush1.xpose.msra.mxu0 0.0
  %130 = vmatprep.subr.mxu0 0.0
  %131 = vmatpush1.xpose.msra.mxu0 0.0
  %132 = vmatprep.subr.mxu0 0.0
  %133 = vmatpush1.xpose.msra.mxu0 0.0
  %134 = vmatprep.subr.mxu0 0.0
  %135 = vmatpush1.xpose.msra.mxu0 0.0
  %136 = vmatprep.subr.mxu0 0.0
  %137 = vmatpush1.xpose.msra.mxu0 0.0
  %138 = vmatprep.subr.mxu0 0.0
  %139 = vmatpush1.xpose.msra.mxu0 0.0
  %140 = vmatprep.subr.mxu0 0.0
  %141 = vmatpush1.xpose.msra.mxu0 0.0
  %142 = vmatprep.subr.mxu0 0.0
  %143 = vmatpush1.xpose.msra.mxu0 0.0
  %144 = vmatprep.subr.mxu0 0.0
  %145 = vmatpush1.xpose.msra.mxu0 0.0
  %146 = vmatprep.subr.mxu0 0.0
  %147 = vmatpush1.xpose.msra.mxu0 0.0
  %148 = vmatprep.mubr.f32.mxu0 0.0
  %149 = vmatmul.mubr.f32.gmra.mrb[0].mxu0 %v49
  %v150 = vpop.f32.mrb[0].mxu0
  %v151 = vadd.f32 %v45, %v150
  %v152 = vpop.f32.mrb[0].mxu0
  %153 = vmatprep.mubr.f32.mxu0 0.0
  %154 = vmatmul.mubr.f32.gmra.mrb[0].mxu0 %v52
  %v155 = vpop.f32.mrb[0].mxu0
  %v156 = vadd.f32 %v45, %v155
  %v157 = vpop.f32.mrb[0].mxu0
  %158 = vmatprep.mubr.f32.mxu0 0.0
  %159 = vmatmul.mubr.f32.gmra.mrb[0].mxu0 %v55
  %v160 = vpop.f32.mrb[0].mxu0
  %v161 = vadd.f32 %v45, %v160
  %v162 = vpop.f32.mrb[0].mxu0
  %163 = vmatprep.mubr.f32.mxu0 0.0
  %164 = vmatmul.mubr.f32.gmra.mrb[0].mxu0 %v58
  %v165 = vpop.f32.mrb[0].mxu0
  %v166 = vadd.f32 %v45, %v165
  %v167 = vpop.f32.mrb[0].mxu0
  %168 = vmatprep.mubr.f32.mxu0 0.0
  %169 = vmatmul.mubr.f32.gmra.mrb[0].mxu0 %v61
  %v170 = vpop.f32.mrb[0].mxu0
  %v171 = vadd.f32 %v45, %v170
  %v172 = vpop.f32.mrb[0].mxu0
  %173 = vmatprep.mubr.f32.mxu0 0.0
  %174 = vmatmul.mubr.f32.gmra.mrb[0].mxu0 %v64
  %v175 = vpop.f32.mrb[0].mxu0
  %v176 = vadd.f32 %v45, %v175
  %v177 = vpop.f32.mrb[0].mxu0
  %178 = vmatprep.mubr.f32.mxu0 0.0
  %179 = vmatmul.mubr.f32.gmra.mrb[0].mxu0 %v67
  %v180 = vpop.f32.mrb[0].mxu0
  %v181 = vadd.f32 %v45, %v180
  %v182 = vpop.f32.mrb[0].mxu0
  %183 = vmatprep.mubr.f32.mxu0 0.0
  %184 = vmatmul.mubr.f32.gmra.mrb[0].mxu0 %v70
  %v185 = vpop.f32.mrb[0].mxu0
  %v186 = vadd.f32 %v45, %v185
  %v187 = vpop.f32.mrb[0].mxu0
  %188 = vdwg.mxu0
  %v189 = vld [vmem:[%s2] sm:$0xff]
  %v190 = vld [vmem:[%s2 + $0x8] sm:$0xff]
  %v191 = vld [vmem:[%s2 + $0x10] sm:$0xff]
  %v192 = vld [vmem:[%s2 + $0x18] sm:$0xff]
  %v193 = vtanh.pop %v151
  %vm194 = vcmask 261120
  %v196 = vsel %vm194, %v193, 0
  %v199 = vsel %vm194, %v189, 0
  %v202 = vsel %vm194, %v190, 0
  %v205 = vsel %vm194, %v191, 0
  %v208 = vsel %vm194, %v192, 0
  %210 = vmatprep.subr.mxu0 0.0
  %211 = vmatpush1.xpose.msra.mxu0 %v199
  %212 = vmatprep.subr.mxu0 0.0
  %213 = vmatpush1.xpose.msra.mxu0 %v202
  %214 = vmatprep.subr.mxu0 0.0
  %215 = vmatpush1.xpose.msra.mxu0 %v205
  %216 = vmatprep.subr.mxu0 0.0
  %217 = vmatpush1.xpose.msra.mxu0 %v208
  %218 = vmatprep.subr.mxu0 0.0
  %219 = vmatpush1.xpose.msra.mxu0 0.0
  %220 = vmatprep.subr.mxu0 0.0
  %221 = vmatpush1.xpose.msra.mxu0 0.0
  %222 = vmatprep.subr.mxu0 0.0
  %223 = vmatpush1.xpose.msra.mxu0 0.0
  %224 = vmatprep.subr.mxu0 0.0
  %225 = vmatpush1.xpose.msra.mxu0 0.0
  %226 = vmatprep.subr.mxu0 0.0
  %227 = vmatpush1.xpose.msra.mxu0 0.0
  %228 = vmatprep.subr.mxu0 0.0
  %229 = vmatpush1.xpose.msra.mxu0 0.0
  %230 = vmatprep.subr.mxu0 0.0
  %231 = vmatpush1.xpose.msra.mxu0 0.0
  %232 = vmatprep.subr.mxu0 0.0
  %233 = vmatpush1.xpose.msra.mxu0 0.0
  %234 = vmatprep.subr.mxu0 0.0
  %235 = vmatpush1.xpose.msra.mxu0 0.0
  %236 = vmatprep.subr.mxu0 0.0
  %237 = vmatpush1.xpose.msra.mxu0 0.0
  %238 = vmatprep.subr.mxu0 0.0
  %239 = vmatpush1.xpose.msra.mxu0 0.0
  %240 = vmatprep.subr.mxu0 0.0
  %241 = vmatpush1.xpose.msra.mxu0 0.0
  %242 = vmatprep.subr.mxu0 0.0
  %243 = vmatpush1.xpose.msra.mxu0 0.0
  %244 = vmatprep.subr.mxu0 0.0
  %245 = vmatpush1.xpose.msra.mxu0 0.0
  %246 = vmatprep.subr.mxu0 0.0
  %247 = vmatpush1.xpose.msra.mxu0 0.0
  %248 = vmatprep.subr.mxu0 0.0
  %249 = vmatpush1.xpose.msra.mxu0 0.0
  %250 = vmatprep.subr.mxu0 0.0
  %251 = vmatpush1.xpose.msra.mxu0 0.0
  %252 = vmatprep.subr.mxu0 0.0
  %253 = vmatpush1.xpose.msra.mxu0 0.0
  %254 = vmatprep.subr.mxu0 0.0
  %255 = vmatpush1.xpose.msra.mxu0 0.0
  %256 = vmatprep.subr.mxu0 0.0
  %257 = vmatpush1.xpose.msra.mxu0 0.0
  %258 = vmatprep.subr.mxu0 0.0
  %259 = vmatpush1.xpose.msra.mxu0 0.0
  %260 = vmatprep.subr.mxu0 0.0
  %261 = vmatpush1.xpose.msra.mxu0 0.0
  %262 = vmatprep.subr.mxu0 0.0
  %263 = vmatpush1.xpose.msra.mxu0 0.0
  %264 = vmatprep.subr.mxu0 0.0
  %265 = vmatpush1.xpose.msra.mxu0 0.0
  %266 = vmatprep.subr.mxu0 0.0
  %267 = vmatpush1.xpose.msra.mxu0 0.0
  %268 = vmatprep.subr.mxu0 0.0
  %269 = vmatpush1.xpose.msra.mxu0 0.0
  %270 = vmatprep.subr.mxu0 0.0
  %271 = vmatpush1.xpose.msra.mxu0 0.0
  %272 = vmatprep.subr.mxu0 0.0
  %273 = vmatpush1.xpose.msra.mxu0 0.0
  %274 = vmatprep.mubr.f32.mxu0 0.0
  %275 = vmatmul.mubr.f32.gmra.mrb[0].mxu0 %v196
  %v276 = vpop.f32.mrb[0].mxu0
  %v277 = vadd.f32 0.0, %v276
  %v278 = vpop.f32.mrb[0].mxu0
  %279 = vdwg.mxu0
  %v280 = vadd.f32 %v156, %v277
  %v281 = vtanh.pop %v280
  %v283 = vsel %vm194, %v281, 0
  %285 = vmatprep.subr.mxu0 0.0
  %286 = vmatpush1.xpose.msra.mxu0 %v199
  %287 = vmatprep.subr.mxu0 0.0
  %288 = vmatpush1.xpose.msra.mxu0 %v202
  %289 = vmatprep.subr.mxu0 0.0
  %290 = vmatpush1.xpose.msra.mxu0 %v205
  %291 = vmatprep.subr.mxu0 0.0
  %292 = vmatpush1.xpose.msra.mxu0 %v208
  %293 = vmatprep.subr.mxu0 0.0
  %294 = vmatpush1.xpose.msra.mxu0 0.0
  %295 = vmatprep.subr.mxu0 0.0
  %296 = vmatpush1.xpose.msra.mxu0 0.0
  %297 = vmatprep.subr.mxu0 0.0
  %298 = vmatpush1.xpose.msra.mxu0 0.0
  %299 = vmatprep.subr.mxu0 0.0
  %300 = vmatpush1.xpose.msra.mxu0 0.0
  %301 = vmatprep.subr.mxu0 0.0
  %302 = vmatpush1.xpose.msra.mxu0 0.0
  %303 = vmatprep.subr.mxu0 0.0
  %304 = vmatpush1.xpose.msra.mxu0 0.0
  %305 = vmatprep.subr.mxu0 0.0
  %306 = vmatpush1.xpose.msra.mxu0 0.0
  %307 = vmatprep.subr.mxu0 0.0
  %308 = vmatpush1.xpose.msra.mxu0 0.0
  %309 = vmatprep.subr.mxu0 0.0
  %310 = vmatpush1.xpose.msra.mxu0 0.0
  %311 = vmatprep.subr.mxu0 0.0
  %312 = vmatpush1.xpose.msra.mxu0 0.0
  %313 = vmatprep.subr.mxu0 0.0
  %314 = vmatpush1.xpose.msra.mxu0 0.0
  %315 = vmatprep.subr.mxu0 0.0
  %316 = vmatpush1.xpose.msra.mxu0 0.0
  %317 = vmatprep.subr.mxu0 0.0
  %318 = vmatpush1.xpose.msra.mxu0 0.0
  %319 = vmatprep.subr.mxu0 0.0
  %320 = vmatpush1.xpose.msra.mxu0 0.0
  %321 = vmatprep.subr.mxu0 0.0
  %322 = vmatpush1.xpose.msra.mxu0 0.0
  %323 = vmatprep.subr.mxu0 0.0
  %324 = vmatpush1.xpose.msra.mxu0 0.0
  %325 = vmatprep.subr.mxu0 0.0
  %326 = vmatpush1.xpose.msra.mxu0 0.0
  %327 = vmatprep.subr.mxu0 0.0
  %328 = vmatpush1.xpose.msra.mxu0 0.0
  %329 = vmatprep.subr.mxu0 0.0
  %330 = vmatpush1.xpose.msra.mxu0 0.0
  %331 = vmatprep.subr.mxu0 0.0
  %332 = vmatpush1.xpose.msra.mxu0 0.0
  %333 = vmatprep.subr.mxu0 0.0
  %334 = vmatpush1.xpose.msra.mxu0 0.0
  %335 = vmatprep.subr.mxu0 0.0
  %336 = vmatpush1.xpose.msra.mxu0 0.0
  %337 = vmatprep.subr.mxu0 0.0
  %338 = vmatpush1.xpose.msra.mxu0 0.0
  %339 = vmatprep.subr.mxu0 0.0
  %340 = vmatpush1.xpose.msra.mxu0 0.0
  %341 = vmatprep.subr.mxu0 0.0
  %342 = vmatpush1.xpose.msra.mxu0 0.0
  %343 = vmatprep.subr.mxu0 0.0
  %344 = vmatpush1.xpose.msra.mxu0 0.0
  %345 = vmatprep.subr.mxu0 0.0
  %346 = vmatpush1.xpose.msra.mxu0 0.0
  %347 = vmatprep.subr.mxu0 0.0
  %348 = vmatpush1.xpose.msra.mxu0 0.0
  %349 = vmatprep.mubr.f32.mxu0 0.0
  %350 = vmatmul.mubr.f32.gmra.mrb[0].mxu0 %v283
  %v351 = vpop.f32.mrb[0].mxu0
  %v352 = vadd.f32 0.0, %v351
  %v353 = vpop.f32.mrb[0].mxu0
  %354 = vdwg.mxu0
  %v355 = vadd.f32 %v161, %v352
  %v356 = vtanh.pop %v355
  %v358 = vsel %vm194, %v356, 0
  %360 = vmatprep.subr.mxu0 0.0
  %361 = vmatpush1.xpose.msra.mxu0 %v199
  %362 = vmatprep.subr.mxu0 0.0
  %363 = vmatpush1.xpose.msra.mxu0 %v202
  %364 = vmatprep.subr.mxu0 0.0
  %365 = vmatpush1.xpose.msra.mxu0 %v205
  %366 = vmatprep.subr.mxu0 0.0
  %367 = vmatpush1.xpose.msra.mxu0 %v208
  %368 = vmatprep.subr.mxu0 0.0
  %369 = vmatpush1.xpose.msra.mxu0 0.0
  %370 = vmatprep.subr.mxu0 0.0
  %371 = vmatpush1.xpose.msra.mxu0 0.0
  %372 = vmatprep.subr.mxu0 0.0
  %373 = vmatpush1.xpose.msra.mxu0 0.0
  %374 = vmatprep.subr.mxu0 0.0
  %375 = vmatpush1.xpose.msra.mxu0 0.0
  %376 = vmatprep.subr.mxu0 0.0
  %377 = vmatpush1.xpose.msra.mxu0 0.0
  %378 = vmatprep.subr.mxu0 0.0
  %379 = vmatpush1.xpose.msra.mxu0 0.0
  %380 = vmatprep.subr.mxu0 0.0
  %381 = vmatpush1.xpose.msra.mxu0 0.0
  %382 = vmatprep.subr.mxu0 0.0
  %383 = vmatpush1.xpose.msra.mxu0 0.0
  %384 = vmatprep.subr.mxu0 0.0
  %385 = vmatpush1.xpose.msra.mxu0 0.0
  %386 = vmatprep.subr.mxu0 0.0
  %387 = vmatpush1.xpose.msra.mxu0 0.0
  %388 = vmatprep.subr.mxu0 0.0
  %389 = vmatpush1.xpose.msra.mxu0 0.0
  %390 = vmatprep.subr.mxu0 0.0
  %391 = vmatpush1.xpose.msra.mxu0 0.0
  %392 = vmatprep.subr.mxu0 0.0
  %393 = vmatpush1.xpose.msra.mxu0 0.0
  %394 = vmatprep.subr.mxu0 0.0
  %395 = vmatpush1.xpose.msra.mxu0 0.0
  %396 = vmatprep.subr.mxu0 0.0
  %397 = vmatpush1.xpose.msra.mxu0 0.0
  %398 = vmatprep.subr.mxu0 0.0
  %399 = vmatpush1.xpose.msra.mxu0 0.0
  %400 = vmatprep.subr.mxu0 0.0
  %401 = vmatpush1.xpose.msra.mxu0 0.0
  %402 = vmatprep.subr.mxu0 0.0
  %403 = vmatpush1.xpose.msra.mxu0 0.0
  %404 = vmatprep.subr.mxu0 0.0
  %405 = vmatpush1.xpose.msra.mxu0 0.0
  %406 = vmatprep.subr.mxu0 0.0
  %407 = vmatpush1.xpose.msra.mxu0 0.0
  %408 = vmatprep.subr.mxu0 0.0
  %409 = vmatpush1.xpose.msra.mxu0 0.0
  %410 = vmatprep.subr.mxu0 0.0
  %411 = vmatpush1.xpose.msra.mxu0 0.0
  %412 = vmatprep.subr.mxu0 0.0
  %413 = vmatpush1.xpose.msra.mxu0 0.0
  %414 = vmatprep.subr.mxu0 0.0
  %415 = vmatpush1.xpose.msra.mxu0 0.0
  %416 = vmatprep.subr.mxu0 0.0
  %417 = vmatpush1.xpose.msra.mxu0 0.0
  %418 = vmatprep.subr.mxu0 0.0
  %419 = vmatpush1.xpose.msra.mxu0 0.0
  %420 = vmatprep.subr.mxu0 0.0
  %421 = vmatpush1.xpose.msra.mxu0 0.0
  %422 = vmatprep.subr.mxu0 0.0
  %423 = vmatpush1.xpose.msra.mxu0 0.0
  %424 = vmatprep.mubr.f32.mxu0 0.0
  %425 = vmatmul.mubr.f32.gmra.mrb[0].mxu0 %v358
  %v426 = vpop.f32.mrb[0].mxu0
  %v427 = vadd.f32 0.0, %v426
  %v428 = vpop.f32.mrb[0].mxu0
  %429 = vdwg.mxu0
  %v430 = vadd.f32 %v166, %v427
  %v431 = vtanh.pop %v430
  %v433 = vsel %vm194, %v431, 0
  %435 = vmatprep.subr.mxu0 0.0
  %436 = vmatpush1.xpose.msra.mxu0 %v199
  %437 = vmatprep.subr.mxu0 0.0
  %438 = vmatpush1.xpose.msra.mxu0 %v202
  %439 = vmatprep.subr.mxu0 0.0
  %440 = vmatpush1.xpose.msra.mxu0 %v205
  %441 = vmatprep.subr.mxu0 0.0
  %442 = vmatpush1.xpose.msra.mxu0 %v208
  %443 = vmatprep.subr.mxu0 0.0
  %444 = vmatpush1.xpose.msra.mxu0 0.0
  %445 = vmatprep.subr.mxu0 0.0
  %446 = vmatpush1.xpose.msra.mxu0 0.0
  %447 = vmatprep.subr.mxu0 0.0
  %448 = vmatpush1.xpose.msra.mxu0 0.0
  %449 = vmatprep.subr.mxu0 0.0
  %450 = vmatpush1.xpose.msra.mxu0 0.0
  %451 = vmatprep.subr.mxu0 0.0
  %452 = vmatpush1.xpose.msra.mxu0 0.0
  %453 = vmatprep.subr.mxu0 0.0
  %454 = vmatpush1.xpose.msra.mxu0 0.0
  %455 = vmatprep.subr.mxu0 0.0
  %456 = vmatpush1.xpose.msra.mxu0 0.0
  %457 = vmatprep.subr.mxu0 0.0
  %458 = vmatpush1.xpose.msra.mxu0 0.0
  %459 = vmatprep.subr.mxu0 0.0
  %460 = vmatpush1.xpose.msra.mxu0 0.0
  %461 = vmatprep.subr.mxu0 0.0
  %462 = vmatpush1.xpose.msra.mxu0 0.0
  %463 = vmatprep.subr.mxu0 0.0
  %464 = vmatpush1.xpose.msra.mxu0 0.0
  %465 = vmatprep.subr.mxu0 0.0
  %466 = vmatpush1.xpose.msra.mxu0 0.0
  %467 = vmatprep.subr.mxu0 0.0
  %468 = vmatpush1.xpose.msra.mxu0 0.0
  %469 = vmatprep.subr.mxu0 0.0
  %470 = vmatpush1.xpose.msra.mxu0 0.0
  %471 = vmatprep.subr.mxu0 0.0
  %472 = vmatpush1.xpose.msra.mxu0 0.0
  %473 = vmatprep.subr.mxu0 0.0
  %474 = vmatpush1.xpose.msra.mxu0 0.0
  %475 = vmatprep.subr.mxu0 0.0
  %476 = vmatpush1.xpose.msra.mxu0 0.0
  %477 = vmatprep.subr.mxu0 0.0
  %478 = vmatpush1.xpose.msra.mxu0 0.0
  %479 = vmatprep.subr.mxu0 0.0
  %480 = vmatpush1.xpose.msra.mxu0 0.0
  %481 = vmatprep.subr.mxu0 0.0
  %482 = vmatpush1.xpose.msra.mxu0 0.0
  %483 = vmatprep.subr.mxu0 0.0
  %484 = vmatpush1.xpose.msra.mxu0 0.0
  %485 = vmatprep.subr.mxu0 0.0
  %486 = vmatpush1.xpose.msra.mxu0 0.0
  %487 = vmatprep.subr.mxu0 0.0
  %488 = vmatpush1.xpose.msra.mxu0 0.0
  %489 = vmatprep.subr.mxu0 0.0
  %490 = vmatpush1.xpose.msra.mxu0 0.0
  %491 = vmatprep.subr.mxu0 0.0
  %492 = vmatpush1.xpose.msra.mxu0 0.0
  %493 = vmatprep.subr.mxu0 0.0
  %494 = vmatpush1.xpose.msra.mxu0 0.0
  %495 = vmatprep.subr.mxu0 0.0
  %496 = vmatpush1.xpose.msra.mxu0 0.0
  %497 = vmatprep.subr.mxu0 0.0
  %498 = vmatpush1.xpose.msra.mxu0 0.0
  %499 = vmatprep.mubr.f32.mxu0 0.0
  %500 = vmatmul.mubr.f32.gmra.mrb[0].mxu0 %v433
  %v501 = vpop.f32.mrb[0].mxu0
  %v502 = vadd.f32 0.0, %v501
  %v503 = vpop.f32.mrb[0].mxu0
  %504 = vdwg.mxu0
  %v505 = vadd.f32 %v171, %v502
  %v506 = vtanh.pop %v505
  %v508 = vsel %vm194, %v506, 0
  %510 = vmatprep.subr.mxu0 0.0
  %511 = vmatpush1.xpose.msra.mxu0 %v199
  %512 = vmatprep.subr.mxu0 0.0
  %513 = vmatpush1.xpose.msra.mxu0 %v202
  %514 = vmatprep.subr.mxu0 0.0
  %515 = vmatpush1.xpose.msra.mxu0 %v205
  %516 = vmatprep.subr.mxu0 0.0
  %517 = vmatpush1.xpose.msra.mxu0 %v208
  %518 = vmatprep.subr.mxu0 0.0
  %519 = vmatpush1.xpose.msra.mxu0 0.0
  %520 = vmatprep.subr.mxu0 0.0
  %521 = vmatpush1.xpose.msra.mxu0 0.0
  %522 = vmatprep.subr.mxu0 0.0
  %523 = vmatpush1.xpose.msra.mxu0 0.0
  %524 = vmatprep.subr.mxu0 0.0
  %525 = vmatpush1.xpose.msra.mxu0 0.0
  %526 = vmatprep.subr.mxu0 0.0
  %527 = vmatpush1.xpose.msra.mxu0 0.0
  %528 = vmatprep.subr.mxu0 0.0
  %529 = vmatpush1.xpose.msra.mxu0 0.0
  %530 = vmatprep.subr.mxu0 0.0
  %531 = vmatpush1.xpose.msra.mxu0 0.0
  %532 = vmatprep.subr.mxu0 0.0
  %533 = vmatpush1.xpose.msra.mxu0 0.0
  %534 = vmatprep.subr.mxu0 0.0
  %535 = vmatpush1.xpose.msra.mxu0 0.0
  %536 = vmatprep.subr.mxu0 0.0
  %537 = vmatpush1.xpose.msra.mxu0 0.0
  %538 = vmatprep.subr.mxu0 0.0
  %539 = vmatpush1.xpose.msra.mxu0 0.0
  %540 = vmatprep.subr.mxu0 0.0
  %541 = vmatpush1.xpose.msra.mxu0 0.0
  %542 = vmatprep.subr.mxu0 0.0
  %543 = vmatpush1.xpose.msra.mxu0 0.0
  %544 = vmatprep.subr.mxu0 0.0
  %545 = vmatpush1.xpose.msra.mxu0 0.0
  %546 = vmatprep.subr.mxu0 0.0
  %547 = vmatpush1.xpose.msra.mxu0 0.0
  %548 = vmatprep.subr.mxu0 0.0
  %549 = vmatpush1.xpose.msra.mxu0 0.0
  %550 = vmatprep.subr.mxu0 0.0
  %551 = vmatpush1.xpose.msra.mxu0 0.0
  %552 = vmatprep.subr.mxu0 0.0
  %553 = vmatpush1.xpose.msra.mxu0 0.0
  %554 = vmatprep.subr.mxu0 0.0
  %555 = vmatpush1.xpose.msra.mxu0 0.0
  %556 = vmatprep.subr.mxu0 0.0
  %557 = vmatpush1.xpose.msra.mxu0 0.0
  %558 = vmatprep.subr.mxu0 0.0
  %559 = vmatpush1.xpose.msra.mxu0 0.0
  %560 = vmatprep.subr.mxu0 0.0
  %561 = vmatpush1.xpose.msra.mxu0 0.0
  %562 = vmatprep.subr.mxu0 0.0
  %563 = vmatpush1.xpose.msra.mxu0 0.0
  %564 = vmatprep.subr.mxu0 0.0
  %565 = vmatpush1.xpose.msra.mxu0 0.0
  %566 = vmatprep.subr.mxu0 0.0
  %567 = vmatpush1.xpose.msra.mxu0 0.0
  %568 = vmatprep.subr.mxu0 0.0
  %569 = vmatpush1.xpose.msra.mxu0 0.0
  %570 = vmatprep.subr.mxu0 0.0
  %571 = vmatpush1.xpose.msra.mxu0 0.0
  %572 = vmatprep.subr.mxu0 0.0
  %573 = vmatpush1.xpose.msra.mxu0 0.0
  %574 = vmatprep.mubr.f32.mxu0 0.0
  %575 = vmatmul.mubr.f32.gmra.mrb[0].mxu0 %v508
  %v576 = vpop.f32.mrb[0].mxu0
  %v577 = vadd.f32 0.0, %v576
  %v578 = vpop.f32.mrb[0].mxu0
  %579 = vdwg.mxu0
  %v580 = vadd.f32 %v176, %v577
  %v581 = vtanh.pop %v580
  %v583 = vsel %vm194, %v581, 0
  %585 = vmatprep.subr.mxu0 0.0
  %586 = vmatpush1.xpose.msra.mxu0 %v199
  %587 = vmatprep.subr.mxu0 0.0
  %588 = vmatpush1.xpose.msra.mxu0 %v202
  %589 = vmatprep.subr.mxu0 0.0
  %590 = vmatpush1.xpose.msra.mxu0 %v205
  %591 = vmatprep.subr.mxu0 0.0
  %592 = vmatpush1.xpose.msra.mxu0 %v208
  %593 = vmatprep.subr.mxu0 0.0
  %594 = vmatpush1.xpose.msra.mxu0 0.0
  %595 = vmatprep.subr.mxu0 0.0
  %596 = vmatpush1.xpose.msra.mxu0 0.0
  %597 = vmatprep.subr.mxu0 0.0
  %598 = vmatpush1.xpose.msra.mxu0 0.0
  %599 = vmatprep.subr.mxu0 0.0
  %600 = vmatpush1.xpose.msra.mxu0 0.0
  %601 = vmatprep.subr.mxu0 0.0
  %602 = vmatpush1.xpose.msra.mxu0 0.0
  %603 = vmatprep.subr.mxu0 0.0
  %604 = vmatpush1.xpose.msra.mxu0 0.0
  %605 = vmatprep.subr.mxu0 0.0
  %606 = vmatpush1.xpose.msra.mxu0 0.0
  %607 = vmatprep.subr.mxu0 0.0
  %608 = vmatpush1.xpose.msra.mxu0 0.0
  %609 = vmatprep.subr.mxu0 0.0
  %610 = vmatpush1.xpose.msra.mxu0 0.0
  %611 = vmatprep.subr.mxu0 0.0
  %612 = vmatpush1.xpose.msra.mxu0 0.0
  %613 = vmatprep.subr.mxu0 0.0
  %614 = vmatpush1.xpose.msra.mxu0 0.0
  %615 = vmatprep.subr.mxu0 0.0
  %616 = vmatpush1.xpose.msra.mxu0 0.0
  %617 = vmatprep.subr.mxu0 0.0
  %618 = vmatpush1.xpose.msra.mxu0 0.0
  %619 = vmatprep.subr.mxu0 0.0
  %620 = vmatpush1.xpose.msra.mxu0 0.0
  %621 = vmatprep.subr.mxu0 0.0
  %622 = vmatpush1.xpose.msra.mxu0 0.0
  %623 = vmatprep.subr.mxu0 0.0
  %624 = vmatpush1.xpose.msra.mxu0 0.0
  %625 = vmatprep.subr.mxu0 0.0
  %626 = vmatpush1.xpose.msra.mxu0 0.0
  %627 = vmatprep.subr.mxu0 0.0
  %628 = vmatpush1.xpose.msra.mxu0 0.0
  %629 = vmatprep.subr.mxu0 0.0
  %630 = vmatpush1.xpose.msra.mxu0 0.0
  %631 = vmatprep.subr.mxu0 0.0
  %632 = vmatpush1.xpose.msra.mxu0 0.0
  %633 = vmatprep.subr.mxu0 0.0
  %634 = vmatpush1.xpose.msra.mxu0 0.0
  %635 = vmatprep.subr.mxu0 0.0
  %636 = vmatpush1.xpose.msra.mxu0 0.0
  %637 = vmatprep.subr.mxu0 0.0
  %638 = vmatpush1.xpose.msra.mxu0 0.0
  %639 = vmatprep.subr.mxu0 0.0
  %640 = vmatpush1.xpose.msra.mxu0 0.0
  %641 = vmatprep.subr.mxu0 0.0
  %642 = vmatpush1.xpose.msra.mxu0 0.0
  %643 = vmatprep.subr.mxu0 0.0
  %644 = vmatpush1.xpose.msra.mxu0 0.0
  %645 = vmatprep.subr.mxu0 0.0
  %646 = vmatpush1.xpose.msra.mxu0 0.0
  %647 = vmatprep.subr.mxu0 0.0
  %648 = vmatpush1.xpose.msra.mxu0 0.0
  %649 = vmatprep.mubr.f32.mxu0 0.0
  %650 = vmatmul.mubr.f32.gmra.mrb[0].mxu0 %v583
  %v651 = vpop.f32.mrb[0].mxu0
  %v652 = vadd.f32 0.0, %v651
  %v653 = vpop.f32.mrb[0].mxu0
  %654 = vdwg.mxu0
  %v655 = vadd.f32 %v181, %v652
  %v656 = vtanh.pop %v655
  %v658 = vsel %vm194, %v656, 0
  %660 = vmatprep.subr.mxu0 0.0
  %661 = vmatpush1.xpose.msra.mxu0 %v199
  %662 = vmatprep.subr.mxu0 0.0
  %663 = vmatpush1.xpose.msra.mxu0 %v202
  %664 = vmatprep.subr.mxu0 0.0
  %665 = vmatpush1.xpose.msra.mxu0 %v205
  %666 = vmatprep.subr.mxu0 0.0
  %667 = vmatpush1.xpose.msra.mxu0 %v208
  %668 = vmatprep.subr.mxu0 0.0
  %669 = vmatpush1.xpose.msra.mxu0 0.0
  %670 = vmatprep.subr.mxu0 0.0
  %671 = vmatpush1.xpose.msra.mxu0 0.0
  %672 = vmatprep.subr.mxu0 0.0
  %673 = vmatpush1.xpose.msra.mxu0 0.0
  %674 = vmatprep.subr.mxu0 0.0
  %675 = vmatpush1.xpose.msra.mxu0 0.0
  %676 = vmatprep.subr.mxu0 0.0
  %677 = vmatpush1.xpose.msra.mxu0 0.0
  %678 = vmatprep.subr.mxu0 0.0
  %679 = vmatpush1.xpose.msra.mxu0 0.0
  %680 = vmatprep.subr.mxu0 0.0
  %681 = vmatpush1.xpose.msra.mxu0 0.0
  %682 = vmatprep.subr.mxu0 0.0
  %683 = vmatpush1.xpose.msra.mxu0 0.0
  %684 = vmatprep.subr.mxu0 0.0
  %685 = vmatpush1.xpose.msra.mxu0 0.0
  %686 = vmatprep.subr.mxu0 0.0
  %687 = vmatpush1.xpose.msra.mxu0 0.0
  %688 = vmatprep.subr.mxu0 0.0
  %689 = vmatpush1.xpose.msra.mxu0 0.0
  %690 = vmatprep.subr.mxu0 0.0
  %691 = vmatpush1.xpose.msra.mxu0 0.0
  %692 = vmatprep.subr.mxu0 0.0
  %693 = vmatpush1.xpose.msra.mxu0 0.0
  %694 = vmatprep.subr.mxu0 0.0
  %695 = vmatpush1.xpose.msra.mxu0 0.0
  %696 = vmatprep.subr.mxu0 0.0
  %697 = vmatpush1.xpose.msra.mxu0 0.0
  %698 = vmatprep.subr.mxu0 0.0
  %699 = vmatpush1.xpose.msra.mxu0 0.0
  %700 = vmatprep.subr.mxu0 0.0
  %701 = vmatpush1.xpose.msra.mxu0 0.0
  %702 = vmatprep.subr.mxu0 0.0
  %703 = vmatpush1.xpose.msra.mxu0 0.0
  %704 = vmatprep.subr.mxu0 0.0
  %705 = vmatpush1.xpose.msra.mxu0 0.0
  %706 = vmatprep.subr.mxu0 0.0
  %707 = vmatpush1.xpose.msra.mxu0 0.0
  %708 = vmatprep.subr.mxu0 0.0
  %709 = vmatpush1.xpose.msra.mxu0 0.0
  %710 = vmatprep.subr.mxu0 0.0
  %711 = vmatpush1.xpose.msra.mxu0 0.0
  %712 = vmatprep.subr.mxu0 0.0
  %713 = vmatpush1.xpose.msra.mxu0 0.0
  %714 = vmatprep.subr.mxu0 0.0
  %715 = vmatpush1.xpose.msra.mxu0 0.0
  %716 = vmatprep.subr.mxu0 0.0
  %717 = vmatpush1.xpose.msra.mxu0 0.0
  %718 = vmatprep.subr.mxu0 0.0
  %719 = vmatpush1.xpose.msra.mxu0 0.0
  %720 = vmatprep.subr.mxu0 0.0
  %721 = vmatpush1.xpose.msra.mxu0 0.0
  %722 = vmatprep.subr.mxu0 0.0
  %723 = vmatpush1.xpose.msra.mxu0 0.0
  %724 = vmatprep.mubr.f32.mxu0 0.0
  %725 = vmatmul.mubr.f32.gmra.mrb[0].mxu0 %v658
  %v726 = vpop.f32.mrb[0].mxu0
  %v727 = vadd.f32 0.0, %v726
  %v728 = vpop.f32.mrb[0].mxu0
  %729 = vdwg.mxu0
  %v730 = vadd.f32 %v186, %v727
  %v731 = vtanh.pop %v730
  %v732 = vld [vmem:[%s5] sm:$0xff]
  %v733 = vld [vmem:[%s5 + $0x8] sm:$0xff]
  %v734 = vld [vmem:[%s6] sm:$0x1]
  %v736 = vlaneseq
  %v737 = vshrl.u32 %v736, 7
  %v738 = vsub.s32 0, %v737
  %v739 = vrot.slane %v734, %v738
  %v742 = vsel %vm194, %v731, 0
  %v745 = vsel %vm194, %v732, 0
  %v748 = vsel %vm194, %v733, 0
  %750 = vmatprep.subr.mxu0 0.0
  %751 = vmatpush1.xpose.msra.mxu0 %v745
  %752 = vmatprep.subr.mxu0 0.0
  %753 = vmatpush1.xpose.msra.mxu0 %v748
  %754 = vmatprep.subr.mxu0 0.0
  %755 = vmatpush1.xpose.msra.mxu0 0.0
  %756 = vmatprep.subr.mxu0 0.0
  %757 = vmatpush1.xpose.msra.mxu0 0.0
  %758 = vmatprep.subr.mxu0 0.0
  %759 = vmatpush1.xpose.msra.mxu0 0.0
  %760 = vmatprep.subr.mxu0 0.0
  %761 = vmatpush1.xpose.msra.mxu0 0.0
  %762 = vmatprep.subr.mxu0 0.0
  %763 = vmatpush1.xpose.msra.mxu0 0.0
  %764 = vmatprep.subr.mxu0 0.0
  %765 = vmatpush1.xpose.msra.mxu0 0.0
  %766 = vmatprep.subr.mxu0 0.0
  %767 = vmatpush1.xpose.msra.mxu0 0.0
  %768 = vmatprep.subr.mxu0 0.0
  %769 = vmatpush1.xpose.msra.mxu0 0.0
  %770 = vmatprep.subr.mxu0 0.0
  %771 = vmatpush1.xpose.msra.mxu0 0.0
  %772 = vmatprep.subr.mxu0 0.0
  %773 = vmatpush1.xpose.msra.mxu0 0.0
  %774 = vmatprep.subr.mxu0 0.0
  %775 = vmatpush1.xpose.msra.mxu0 0.0
  %776 = vmatprep.subr.mxu0 0.0
  %777 = vmatpush1.xpose.msra.mxu0 0.0
  %778 = vmatprep.subr.mxu0 0.0
  %779 = vmatpush1.xpose.msra.mxu0 0.0
  %780 = vmatprep.subr.mxu0 0.0
  %781 = vmatpush1.xpose.msra.mxu0 0.0
  %782 = vmatprep.subr.mxu0 0.0
  %783 = vmatpush1.xpose.msra.mxu0 0.0
  %784 = vmatprep.subr.mxu0 0.0
  %785 = vmatpush1.xpose.msra.mxu0 0.0
  %786 = vmatprep.subr.mxu0 0.0
  %787 = vmatpush1.xpose.msra.mxu0 0.0
  %788 = vmatprep.subr.mxu0 0.0
  %789 = vmatpush1.xpose.msra.mxu0 0.0
  %790 = vmatprep.subr.mxu0 0.0
  %791 = vmatpush1.xpose.msra.mxu0 0.0
  %792 = vmatprep.subr.mxu0 0.0
  %793 = vmatpush1.xpose.msra.mxu0 0.0
  %794 = vmatprep.subr.mxu0 0.0
  %795 = vmatpush1.xpose.msra.mxu0 0.0
  %796 = vmatprep.subr.mxu0 0.0
  %797 = vmatpush1.xpose.msra.mxu0 0.0
  %798 = vmatprep.subr.mxu0 0.0
  %799 = vmatpush1.xpose.msra.mxu0 0.0
  %800 = vmatprep.subr.mxu0 0.0
  %801 = vmatpush1.xpose.msra.mxu0 0.0
  %802 = vmatprep.subr.mxu0 0.0
  %803 = vmatpush1.xpose.msra.mxu0 0.0
  %804 = vmatprep.subr.mxu0 0.0
  %805 = vmatpush1.xpose.msra.mxu0 0.0
  %806 = vmatprep.subr.mxu0 0.0
  %807 = vmatpush1.xpose.msra.mxu0 0.0
  %808 = vmatprep.subr.mxu0 0.0
  %809 = vmatpush1.xpose.msra.mxu0 0.0
  %810 = vmatprep.subr.mxu0 0.0
  %811 = vmatpush1.xpose.msra.mxu0 0.0
  %812 = vmatprep.subr.mxu0 0.0
  %813 = vmatpush1.xpose.msra.mxu0 0.0
  %814 = vmatprep.mubr.f32.mxu0 0.0
  %815 = vmatmul.mubr.f32.gmra.mrb[0].mxu0 %v196
  %v816 = vpop.f32.mrb[0].mxu0
  %v817 = vadd.f32 %v739, %v816
  %v818 = vpop.f32.mrb[0].mxu0
  %819 = vmatprep.mubr.f32.mxu0 0.0
  %820 = vmatmul.mubr.f32.gmra.mrb[0].mxu0 %v283
  %v821 = vpop.f32.mrb[0].mxu0
  %v822 = vadd.f32 %v739, %v821
  %v823 = vpop.f32.mrb[0].mxu0
  %824 = vmatprep.mubr.f32.mxu0 0.0
  %825 = vmatmul.mubr.f32.gmra.mrb[0].mxu0 %v358
  %v826 = vpop.f32.mrb[0].mxu0
  %v827 = vadd.f32 %v739, %v826
  %v828 = vpop.f32.mrb[0].mxu0
  %829 = vmatprep.mubr.f32.mxu0 0.0
  %830 = vmatmul.mubr.f32.gmra.mrb[0].mxu0 %v433
  %v831 = vpop.f32.mrb[0].mxu0
  %v832 = vadd.f32 %v739, %v831
  %v833 = vpop.f32.mrb[0].mxu0
  %834 = vmatprep.mubr.f32.mxu0 0.0
  %835 = vmatmul.mubr.f32.gmra.mrb[0].mxu0 %v508
  %v836 = vpop.f32.mrb[0].mxu0
  %v837 = vadd.f32 %v739, %v836
  %v838 = vpop.f32.mrb[0].mxu0
  %839 = vmatprep.mubr.f32.mxu0 0.0
  %840 = vmatmul.mubr.f32.gmra.mrb[0].mxu0 %v583
  %v841 = vpop.f32.mrb[0].mxu0
  %v842 = vadd.f32 %v739, %v841
  %v843 = vpop.f32.mrb[0].mxu0
  %844 = vmatprep.mubr.f32.mxu0 0.0
  %845 = vmatmul.mubr.f32.gmra.mrb[0].mxu0 %v658
  %v846 = vpop.f32.mrb[0].mxu0
  %v847 = vadd.f32 %v739, %v846
  %v848 = vpop.f32.mrb[0].mxu0
  %849 = vmatprep.mubr.f32.mxu0 0.0
  %850 = vmatmul.mubr.f32.gmra.mrb[0].mxu0 %v742
  %v851 = vpop.f32.mrb[0].mxu0
  %v852 = vadd.f32 %v739, %v851
  %v853 = vpop.f32.mrb[0].mxu0
  %854 = vdwg.mxu0
  %855 = vst.msk [vmem:[%s7] sm:$0xff] %vm47, %v817
  %856 = vst.msk [vmem:[%s7 + $0x8] sm:$0xff] %vm47, %v822
  %857 = vst.msk [vmem:[%s7 + $0x10] sm:$0xff] %vm47, %v827
  %858 = vst.msk [vmem:[%s7 + $0x18] sm:$0xff] %vm47, %v832
  %859 = vst.msk [vmem:[%s7 + $0x20] sm:$0xff] %vm47, %v837
  %860 = vst.msk [vmem:[%s7 + $0x28] sm:$0xff] %vm47, %v842
  %861 = vst.msk [vmem:[%s7 + $0x30] sm:$0xff] %vm47, %v847
  %862 = vst.msk [vmem:[%s7 + $0x38] sm:$0xff] %vm47, %v852
  // Predicated region
  $region30: #{rnn_model_forward.1} parent=0 // pred_check
    _
  $region31: #{rnn_model_forward.1} parent=0 // pred_check_branch
    %864 = sbr.rel (0) target = $region33
  $region32: #{rnn_model_forward.1} parent=0 // pred_region
    _
  $region33: #{rnn_model_forward.1} parent=0 // pred_fallthru
    _
  // Predicated region
  $region34: #{rnn_model_forward.1} parent=0 // pred_check
    _
  $region35: #{rnn_model_forward.1} parent=0 // pred_check_branch
    %866 = sbr.rel (0) target = $region37
  $region36: #{rnn_model_forward.1} parent=0 // pred_region
    _
  $region37: #{rnn_model_forward.1} parent=0 // pred_fallthru
    _

</llo_original>
